<compile_context>
chip_gen: v6e
topology: v6e:2x2x1
jax: 0.10.0
libtpu: 0.0.40
codegen_flags: <defaults>
</compile_context>

<pallas_src>
import functools

import jax
import jax.numpy as jnp
from jax.experimental import pallas as pl
from jax.experimental.pallas import tpu as pltpu


# ---------------------------------------------------------------------------
# Conv (3 banded MXU matmuls, zero in-kernel relayout) + partial BN stats.
# ---------------------------------------------------------------------------
def _conv_stats_kernel(x_ref, w_ref, y_ref, stats_ref, *, H, W, Cin, Cout):
    # x_ref:     (1, H+2, (W+2)*Cin)          lane-dense padded input (bf16)
    # w_ref:     (3, (W+2)*Cin, W*Cout)       banded weights, one slab per kh
    # y_ref:     (1, H, W*Cout)               lane-dense packed conv output (bf16)
    # stats_ref: (1, 2, W*Cout)               per-tile [sum, sum_sq], f32
    x = x_ref[0]                                   # (H+2, (W+2)*Cin), bf16

    # f32 accumulator lives in vregs (no cross-step reduction needed).
    acc = jnp.zeros((H, W * Cout), jnp.float32)
    for kh in range(3):                            # 3 accumulated bf16 matmuls
        acc = acc + jnp.dot(x[kh:kh + H, :], w_ref[kh],
                            preferred_element_type=jnp.float32)

    # Single-pass partial statistics in the packed (w*Cout + c) lane layout;
    # reduced over the w axis / combined across tiles in the wrapper.
    s1 = jnp.sum(acc, axis=0, keepdims=True)       # (1, W*Cout)
    s2 = jnp.sum(acc * acc, axis=0, keepdims=True)
    stats_ref[...] = jnp.concatenate([s1, s2], axis=0)[None]

    y_ref[...] = acc[None].astype(y_ref.dtype)     # lane-dense bf16 store


def _vmem_limit_bytes():
    # Budget against the actual per-core VMEM (64 MiB/TC on v7x, 128 MiB on
    # v5e/v6e), leaving headroom for Mosaic's own scratch.
    try:
        cap = int(pltpu.get_tpu_info().vmem_capacity_bytes)
    except Exception:
        cap = 64 * 1024 * 1024
    return max(min(cap - 16 * 1024 * 1024, 100 * 1024 * 1024), 32 * 1024 * 1024)


def _banded_weights(w_oihw, W):
    """(Cout, Cin, 3, 3) -> (3, (W+2)*Cin, W*Cout) banded im2col-free weights.

    band[kh, p*Cin+ci, w*Cout+co] = w[co, ci, kh, p-w] if 0 <= p-w < 3 else 0,
    so acc[h, w*Cout+co] = sum_kh  x_row[h+kh, :] @ band[kh]  is the 3x3 conv
    directly in the packed lane layout.
    """
    Cout, Cin = w_oihw.shape[0], w_oihw.shape[1]
    wt = jnp.transpose(w_oihw, (2, 3, 1, 0)).astype(jnp.float32)  # (kh,kw,ci,co)
    kw_i = jnp.arange(3)[:, None, None]
    p_i = jnp.arange(W + 2)[None, :, None]
    w_i = jnp.arange(W)[None, None, :]
    sel = (p_i == w_i + kw_i).astype(jnp.float32)                 # (3, W+2, W)
    band = jnp.einsum("kpw,hkio->hpiwo", sel, wt)                 # (3,W+2,Cin,W,Cout)
    return band.reshape(3, (W + 2) * Cin, W * Cout).astype(jnp.bfloat16)


def block_forward(x_nchw, w_oihw, bias, gamma, beta,
                  *, negative_slope=0.01, eps=1e-5):
    """Forward pass of `Block` (stride=1). x_nchw: (N, Cin, H, W)."""
    # Conv bias is exactly cancelled by training-mode BN mean subtraction.
    del bias
    N, Cin, H, W = x_nchw.shape
    Cout = w_oihw.shape[0]
    WC = W * Cout

    # NCHW -> lane-dense padded (N, H+2, (W+2)*Cin), bf16 MXU operands.
    x_nhwc = jnp.transpose(x_nchw, (0, 2, 3, 1)).astype(jnp.bfloat16)
    x_pad = jnp.pad(x_nhwc, ((0, 0), (1, 1), (1, 1), (0, 0)))
    x_lane = x_pad.reshape(N, H + 2, (W + 2) * Cin)

    w_band = _banded_weights(w_oihw, W)            # (3, (W+2)*Cin, W*Cout), bf16

    kernel = functools.partial(_conv_stats_kernel, H=H, W=W, Cin=Cin, Cout=Cout)
    y_packed, stats = pl.pallas_call(
        kernel,
        grid=(N,),
        in_specs=[
            pl.BlockSpec((1, H + 2, (W + 2) * Cin), lambda n: (n, 0, 0)),
            pl.BlockSpec((3, (W + 2) * Cin, WC), lambda n: (0, 0, 0)),  # resident
        ],
        out_specs=[
            pl.BlockSpec((1, H, WC), lambda n: (n, 0, 0)),
            pl.BlockSpec((1, 2, WC), lambda n: (n, 0, 0)),
        ],
        out_shape=[
            jax.ShapeDtypeStruct((N, H, WC), jnp.bfloat16),
            jax.ShapeDtypeStruct((N, 2, WC), jnp.float32),
        ],
        compiler_params=pltpu.CompilerParams(
            dimension_semantics=("parallel",),
            vmem_limit_bytes=_vmem_limit_bytes(),
        ),
    )(x_lane, w_band)

    # Tiny cross-tile stats reduction + BN fold (training mode, biased var).
    # NOTE: E[x^2]-E[x]^2 in f32 is adequate at the 5e-2 tolerance; switch to
    # centered per-tile sums if the tolerance is ever tightened.
    total = float(N * H * W)
    stats_c = stats.reshape(N, 2, W, Cout)
    mean = jnp.sum(stats_c[:, 0], axis=(0, 1)) / total
    var = jnp.maximum(jnp.sum(stats_c[:, 1], axis=(0, 1)) / total - mean * mean,
                      0.0)
    scale = gamma.astype(jnp.float32) * jax.lax.rsqrt(var + eps)
    shift = beta.astype(jnp.float32) - mean * scale

    # BN scale/shift + LeakyReLU fused by XLA into the packed -> NCHW output
    # transpose: one read + one write of the activation, no extra pass.
    y = y_packed.astype(jnp.float32).reshape(N, H, W, Cout)
    z = y * scale.reshape(1, 1, 1, Cout) + shift.reshape(1, 1, 1, Cout)
    z = jnp.maximum(z, negative_slope * z)
    return jnp.transpose(z, (0, 3, 1, 2))          # back to NCHW


def init_block_params(key, in_channels, out_channels):
    """Parameter init with shapes matching nn.Conv2d / nn.BatchNorm2d."""
    kw, kb = jax.random.split(key)
    fan_in = in_channels * 3 * 3
    bound = 1.0 / (fan_in ** 0.5)
    w = jax.random.uniform(kw, (out_channels, in_channels, 3, 3),
                           jnp.float32, -bound, bound)
    b = jax.random.uniform(kb, (out_channels,), jnp.float32, -bound, bound)
    gamma = jnp.ones((out_channels,), jnp.float32)
    beta = jnp.zeros((out_channels,), jnp.float32)
    return w, b, gamma, beta


def _reference(x, w, b, gamma, beta, negative_slope=0.01, eps=1e-5):
    """Pure-JAX f32 reference matching the PyTorch module (bias included)."""
    y = jax.lax.conv_general_dilated(
        x, w, window_strides=(1, 1), padding=((1, 1), (1, 1)),
        dimension_numbers=("NCHW", "OIHW", "NCHW"))
    y = y + b.reshape(1, -1, 1, 1)
    mean = jnp.mean(y, axis=(0, 2, 3), keepdims=True)
    var = jnp.mean((y - mean) ** 2, axis=(0, 2, 3), keepdims=True)
    yhat = (y - mean) * jax.lax.rsqrt(var + eps)
    z = yhat * gamma.reshape(1, -1, 1, 1) + beta.reshape(1, -1, 1, 1)
    return jnp.where(z >= 0, z, negative_slope * z)


if __name__ == "__main__":
    key = jax.random.PRNGKey(0)
    k_x, k_p = jax.random.split(key)

    N, Cin, Cout, H, W = 2, 4, 8, 16, 16
    x = jax.random.normal(k_x, (N, Cin, H, W), jnp.float32)
    w, b, gamma, beta = init_block_params(k_p, Cin, Cout)

    fwd = jax.jit(block_forward)
    out = jax.block_until_ready(fwd(x, w, b, gamma, beta))

    assert out.shape == (N, Cout, H, W), out.shape
    assert bool(jnp.all(jnp.isfinite(out)))

    ref = _reference(x, w, b, gamma, beta)
    max_err = float(jnp.max(jnp.abs(out - ref)))
    assert max_err < 5e-2, f"max abs error vs reference: {max_err}"

    print("KERNEL_OK")
</pallas_src>

<mosaic_0001>
module attributes {stable_mosaic.version = 11 : i64} {
  func.func @_conv_stats_kernel(%arg0: i32, %arg1: memref<1x18x72xbf16, #tpu.memory_space<vmem>>, %arg2: memref<3x72x128xbf16, #tpu.memory_space<vmem>>, %arg3: memref<1x16x128xbf16, #tpu.memory_space<vmem>>, %arg4: memref<1x2x128xf32, #tpu.memory_space<vmem>>) attributes {dimension_semantics = [#tpu.dimension_semantics<parallel>], iteration_bounds = array<i64: 2>, scalar_prefetch = 0 : i64, scratch_operands = 0 : i64, tpu.core_type = #tpu.core_type<tc>, window_params = [{transform_indices = @transform_0, window_bounds = array<i64: 1, 18, 72>}, {pipeline_mode = #tpu.pipeline_mode<synchronous>, transform_indices = @transform_1, window_bounds = array<i64: 3, 72, 128>}, {transform_indices = @transform_2, window_bounds = array<i64: 1, 16, 128>}, {transform_indices = @transform_3, window_bounds = array<i64: 1, 2, 128>}]} {
    %c0 = arith.constant 0 : index
    %c0_0 = arith.constant 0 : index
    %c0_1 = arith.constant 0 : index
    %0 = vector.load %arg1[%c0, %c0_0, %c0_1] : memref<1x18x72xbf16, #tpu.memory_space<vmem>>, vector<1x18x72xbf16>
    %1 = vector.shape_cast %0 : vector<1x18x72xbf16> to vector<18x72xbf16>
    %cst = arith.constant 0.000000e+00 : f32
    %2 = vector.broadcast %cst : f32 to vector<16x128xf32>
    %3 = vector.extract_strided_slice %1 {offsets = [0, 0], sizes = [16, 72], strides = [1, 1]} : vector<18x72xbf16> to vector<16x72xbf16>
    %c0_2 = arith.constant 0 : index
    %c0_3 = arith.constant 0 : index
    %c0_4 = arith.constant 0 : index
    %4 = vector.load %arg2[%c0_2, %c0_3, %c0_4] : memref<3x72x128xbf16, #tpu.memory_space<vmem>>, vector<1x72x128xbf16>
    %5 = vector.shape_cast %4 : vector<1x72x128xbf16> to vector<72x128xbf16>
    %cst_5 = arith.constant dense<0.000000e+00> : vector<16x128xf32>
    %6 = tpu.matmul %3, %5, %cst_5 {dimension_numbers = #tpu.dot_dimension_numbers<[1], [0], [0], [1], [0, 0, 1, 1], [], []>} : vector<16x72xbf16>, vector<72x128xbf16>, vector<16x128xf32> -> vector<16x128xf32>
    %7 = arith.addf %2, %6 : vector<16x128xf32>
    %8 = vector.extract_strided_slice %1 {offsets = [1, 0], sizes = [16, 72], strides = [1, 1]} : vector<18x72xbf16> to vector<16x72xbf16>
    %c1 = arith.constant 1 : index
    %c0_6 = arith.constant 0 : index
    %c0_7 = arith.constant 0 : index
    %9 = vector.load %arg2[%c1, %c0_6, %c0_7] : memref<3x72x128xbf16, #tpu.memory_space<vmem>>, vector<1x72x128xbf16>
    %10 = vector.shape_cast %9 : vector<1x72x128xbf16> to vector<72x128xbf16>
    %cst_8 = arith.constant dense<0.000000e+00> : vector<16x128xf32>
    %11 = tpu.matmul %8, %10, %cst_8 {dimension_numbers = #tpu.dot_dimension_numbers<[1], [0], [0], [1], [0, 0, 1, 1], [], []>} : vector<16x72xbf16>, vector<72x128xbf16>, vector<16x128xf32> -> vector<16x128xf32>
    %12 = arith.addf %7, %11 : vector<16x128xf32>
    %13 = vector.extract_strided_slice %1 {offsets = [2, 0], sizes = [16, 72], strides = [1, 1]} : vector<18x72xbf16> to vector<16x72xbf16>
    %c2 = arith.constant 2 : index
    %c0_9 = arith.constant 0 : index
    %c0_10 = arith.constant 0 : index
    %14 = vector.load %arg2[%c2, %c0_9, %c0_10] : memref<3x72x128xbf16, #tpu.memory_space<vmem>>, vector<1x72x128xbf16>
    %15 = vector.shape_cast %14 : vector<1x72x128xbf16> to vector<72x128xbf16>
    %cst_11 = arith.constant dense<0.000000e+00> : vector<16x128xf32>
    %16 = tpu.matmul %13, %15, %cst_11 {dimension_numbers = #tpu.dot_dimension_numbers<[1], [0], [0], [1], [0, 0, 1, 1], [], []>} : vector<16x72xbf16>, vector<72x128xbf16>, vector<16x128xf32> -> vector<16x128xf32>
    %17 = arith.addf %12, %16 : vector<16x128xf32>
    %cst_12 = arith.constant dense<0.000000e+00> : vector<128xf32>
    %18 = vector.multi_reduction <add>, %17, %cst_12 [0] : vector<16x128xf32> to vector<128xf32>
    %19 = vector.shape_cast %18 : vector<128xf32> to vector<1x128xf32>
    %20 = arith.mulf %17, %17 : vector<16x128xf32>
    %cst_13 = arith.constant dense<0.000000e+00> : vector<128xf32>
    %21 = vector.multi_reduction <add>, %20, %cst_13 [0] : vector<16x128xf32> to vector<128xf32>
    %22 = vector.shape_cast %21 : vector<128xf32> to vector<1x128xf32>
    %23 = tpu.concatenate %19, %22 in 0 : vector<1x128xf32>, vector<1x128xf32> -> vector<2x128xf32>
    %24 = vector.shape_cast %23 : vector<2x128xf32> to vector<1x2x128xf32>
    %c0_14 = arith.constant 0 : index
    %c0_15 = arith.constant 0 : index
    %c0_16 = arith.constant 0 : index
    %25 = vector.load %arg4[%c0_14, %c0_15, %c0_16] : memref<1x2x128xf32, #tpu.memory_space<vmem>>, vector<1x2x128xf32>
    tpu.vector_store %arg4[%c0_14, %c0_15, %c0_16], %24 {strides = array<i32>} : memref<1x2x128xf32, #tpu.memory_space<vmem>>, vector<1x2x128xf32>,
    %26 = vector.shape_cast %17 : vector<16x128xf32> to vector<1x16x128xf32>
    %27 = arith.truncf %26 : vector<1x16x128xf32> to vector<1x16x128xbf16>
    %c0_17 = arith.constant 0 : index
    %c0_18 = arith.constant 0 : index
    %c0_19 = arith.constant 0 : index
    %28 = vector.load %arg3[%c0_17, %c0_18, %c0_19] : memref<1x16x128xbf16, #tpu.memory_space<vmem>>, vector<1x16x128xbf16>
    tpu.vector_store %arg3[%c0_17, %c0_18, %c0_19], %27 {strides = array<i32>} : memref<1x16x128xbf16, #tpu.memory_space<vmem>>, vector<1x16x128xbf16>,
    return
  }
  func.func @transform_0(%arg0: i32) -> (i32, i32, i32) {
    %c0_i32 = arith.constant 0 : i32
    %c0_i32_0 = arith.constant 0 : i32
    %c0_i32_1 = arith.constant 0 : i32
    return %arg0, %c0_i32, %c0_i32_0 : i32, i32, i32
  }
  func.func @transform_1(%arg0: i32) -> (i32, i32, i32) {
    %c0_i32 = arith.constant 0 : i32
    %c0_i32_0 = arith.constant 0 : i32
    %c0_i32_1 = arith.constant 0 : i32
    %c0_i32_2 = arith.constant 0 : i32
    return %c0_i32, %c0_i32_0, %c0_i32_1 : i32, i32, i32
  }
  func.func @transform_2(%arg0: i32) -> (i32, i32, i32) {
    %c0_i32 = arith.constant 0 : i32
    %c0_i32_0 = arith.constant 0 : i32
    %c0_i32_1 = arith.constant 0 : i32
    return %arg0, %c0_i32, %c0_i32_0 : i32, i32, i32
  }
  func.func @transform_3(%arg0: i32) -> (i32, i32, i32) {
    %c0_i32 = arith.constant 0 : i32
    %c0_i32_0 = arith.constant 0 : i32
    %c0_i32_1 = arith.constant 0 : i32
    return %arg0, %c0_i32, %c0_i32_0 : i32, i32, i32
  }
}

</mosaic_0001>

<llo_original>
// kernel: block_forward.1
$region0: #{block_forward.1}
  #allocation0 [shape = 'u32[]', space=smem, size = 0x4, offset = 0x4, fixed_abs, tag = 'smem constant byte address 0x4 - core index']
  #allocation1 [shape = 'u32[144,128]{1,0:T(1,128)}', space=vmem, size = 0x12000, scoped, tag = 'internal scratch']
  %s0 = inlined_call_operand.vmem [shape: bf16[2,18,72], index: 0, kind: input, shape index: {}]
  %s1 = inlined_call_operand.vmem [shape: bf16[3,72,128], index: 1, kind: input, shape index: {}]
  %s2 = inlined_call_operand.vmem [shape: bf16[2,16,128], index: 2, kind: output, shape index: {0}]
  %s3 = inlined_call_operand.vmem [shape: f32[2,2,128], index: 3, kind: output, shape index: {1}]
  %4 = xla_tuple %s2, %s3
  %s5 = sld [smem:[#allocation0]]
  $region49: #{block_forward.1} parent=0
    _
  %s7 = ssub.s32 1, %s5
  %s8 = scalar_select 0, %s7, %s5
  loop: start=0, step=1, limit=4
  $region2: #{block_forward.1} parent=0 // loop_pre_header
    _
  $region3: #{block_forward.1} parent=0 // loop_header
    %s10 = sphi 0, %s14
    %p11 = scmp.ge.s32.totalorder %s10, 4
    %s20 = sphi 0, %s22
    %s23 = sphi 0, %s20
    %s24 = sphi 0, %s23
    %s40 = sphi 0, %s24
    %s44 = sphi 0, %s44
    %s46 = sphi 0, %s44
    %s47 = sphi 0, %s46
    %s61 = sphi 0, %s47
    %s67 = sphi 0, %s69
    %s70 = sphi 0, %s67
    %s71 = sphi 0, %s70
    %s87 = sphi 0, %s71
    %s93 = sphi 0, %s95
    %s96 = sphi 0, %s93
    %s97 = sphi 0, %s96
    %s113 = sphi 0, %s97
  $region4: #{block_forward.1} parent=0 // loop_header_branch
    %13 = sbr.rel (%p11) target = $region8
  $region5: #{block_forward.1} parent=0 // loop_body
    %s15 = ssub.s32 %s10, 1
    %s16 = ssub.s32 %s10, 2
    %s17 = sadd.s32 %s10, 1
    %s18 = ssub.s32 %s10, %s17
    %p19 = scmp.eq.s32.totalorder %s18, 0
    %s21 = sadd.s32 %s20, 1
    %s22 = scalar_select %p19, %s20, %s21
    %p25 = pneg %p19
    %p26 = scmp.eq.s32.totalorder %s10, 1
    %p27 = por %p25, %p26
    %p28 = scmp.ne.s32.totalorder %s20, %s23
    %p29 = scmp.eq.s32.totalorder %s10, 0
    %p30 = por %p28, %p29
    %p31 = scmp.ne.s32.totalorder %s20, %s23
    %p32 = scmp.eq.s32.totalorder %s15, 1
    %p33 = por %p31, %p32
    %p34 = scmp.ne.s32.totalorder %s23, %s24
    %p35 = scmp.eq.s32.totalorder %s15, 0
    %p36 = por %p34, %p35
    %p37 = scmp.ne.s32.totalorder %s23, %s24
    %p38 = scmp.eq.s32.totalorder %s16, 1
    %p39 = por %p37, %p38
    %p41 = scmp.ne.s32.totalorder %s24, %s40
    %p42 = scmp.eq.s32.totalorder %s16, 0
    %p43 = por %p41, %p42
    %s45 = sadd.s32 %s44, 1
    %p48 = scmp.eq.s32.totalorder %s10, 1
    %p49 = scmp.ne.s32.totalorder %s44, %s46
    %p50 = scmp.eq.s32.totalorder %s10, 0
    %p51 = por %p49, %p50
    %p52 = scmp.ne.s32.totalorder %s44, %s46
    %p53 = scmp.eq.s32.totalorder %s15, 1
    %p54 = por %p52, %p53
    %p55 = scmp.ne.s32.totalorder %s46, %s47
    %p56 = scmp.eq.s32.totalorder %s15, 0
    %p57 = por %p55, %p56
    %p58 = scmp.ne.s32.totalorder %s46, %s47
    %p59 = scmp.eq.s32.totalorder %s16, 1
    %p60 = por %p58, %p59
    %p62 = scmp.ne.s32.totalorder %s47, %s61
    %p63 = scmp.eq.s32.totalorder %s16, 0
    %p64 = por %p62, %p63
    %s65 = ssub.s32 %s10, %s17
    %p66 = scmp.eq.s32.totalorder %s65, 0
    %s68 = sadd.s32 %s67, 1
    %s69 = scalar_select %p66, %s67, %s68
    %p72 = pneg %p66
    %p73 = scmp.eq.s32.totalorder %s10, 1
    %p74 = por %p72, %p73
    %p75 = scmp.ne.s32.totalorder %s67, %s70
    %p76 = scmp.eq.s32.totalorder %s10, 0
    %p77 = por %p75, %p76
    %p78 = scmp.ne.s32.totalorder %s67, %s70
    %p79 = scmp.eq.s32.totalorder %s15, 1
    %p80 = por %p78, %p79
    %p81 = scmp.ne.s32.totalorder %s70, %s71
    %p82 = scmp.eq.s32.totalorder %s15, 0
    %p83 = por %p81, %p82
    %p84 = scmp.ne.s32.totalorder %s70, %s71
    %p85 = scmp.eq.s32.totalorder %s16, 1
    %p86 = por %p84, %p85
    %p88 = scmp.ne.s32.totalorder %s71, %s87
    %p89 = scmp.eq.s32.totalorder %s16, 0
    %p90 = por %p88, %p89
    %s91 = ssub.s32 %s10, %s17
    %p92 = scmp.eq.s32.totalorder %s91, 0
    %s94 = sadd.s32 %s93, 1
    %s95 = scalar_select %p92, %s93, %s94
    %p98 = pneg %p92
    %p99 = scmp.eq.s32.totalorder %s10, 1
    %p100 = por %p98, %p99
    %p101 = scmp.ne.s32.totalorder %s93, %s96
    %p102 = scmp.eq.s32.totalorder %s10, 0
    %p103 = por %p101, %p102
    %p104 = scmp.ne.s32.totalorder %s93, %s96
    %p105 = scmp.eq.s32.totalorder %s15, 1
    %p106 = por %p104, %p105
    %p107 = scmp.ne.s32.totalorder %s96, %s97
    %p108 = scmp.eq.s32.totalorder %s15, 0
    %p109 = por %p107, %p108
    %p110 = scmp.ne.s32.totalorder %s96, %s97
    %p111 = scmp.eq.s32.totalorder %s16, 1
    %p112 = por %p110, %p111
    %p114 = scmp.ne.s32.totalorder %s97, %s113
    %p115 = scmp.eq.s32.totalorder %s16, 0
    %p116 = por %p114, %p115
    %p117 = scmp.le.s32.totalorder 1, %s10
    %p118 = scmp.lt.s32.totalorder %s10, 3
    %p119 = pnand %p117, %p118
    %p120 = pneg %p119
    // Predicated region
    $region9: #{block_forward.1} parent=5 // pred_check
      _
    $region10: #{block_forward.1} parent=5 // pred_check_branch
      %122 = sbr.rel (%p119) target = $region12
    $region11: #{block_forward.1} parent=5 // pred_region
      %s123 = ssub.s32 %s10, 1
      // Predicated region
      $region13: #{block_forward.1} parent=11 // pred_check
        %p124 = pneg %p57
      $region14: #{block_forward.1} parent=11 // pred_check_branch
        %126 = sbr.rel (%p124) target = $region16
      $region15: #{block_forward.1} parent=11 // pred_region
        _
      $region16: #{block_forward.1} parent=11 // pred_fallthru
        _
    $region12: #{block_forward.1} parent=5 // pred_fallthru
      _
    %p127 = scmp.lt.s32.totalorder %s10, 2
    // Predicated region
    $region17: #{block_forward.1} parent=5 // pred_check
      %p128 = pneg %p127
    $region18: #{block_forward.1} parent=5 // pred_check_branch
      %130 = sbr.rel (%p128) target = $region20
    $region19: #{block_forward.1} parent=5 // pred_region
      // Predicated region
      $region21: #{block_forward.1} parent=19 // pred_check
        %p131 = pneg %p30
      $region22: #{block_forward.1} parent=19 // pred_check_branch
        %133 = sbr.rel (%p131) target = $region24
      $region23: #{block_forward.1} parent=19 // pred_region
        %p134 = scmp.lt.s32.totalorder %s10, 1
        %s135 = scalar_select %p134, %s10, 1
        %s136 = smul.addr %s135, 3
        %s137 = smul.addr %s136, 4
        %s138 = scalar_lea.vmem %s0, %s137
      $region24: #{block_forward.1} parent=19 // pred_fallthru
        _
    $region20: #{block_forward.1} parent=5 // pred_fallthru
      _
    %p139 = scmp.le.s32.totalorder 1, %s10
    %p140 = scmp.lt.s32.totalorder %s10, 3
    %p141 = pnand %p139, %p140
    %p142 = pneg %p141
    // Predicated region
    $region25: #{block_forward.1} parent=5 // pred_check
      _
    $region26: #{block_forward.1} parent=5 // pred_check_branch
      %144 = sbr.rel (%p141) target = $region28
    $region27: #{block_forward.1} parent=5 // pred_region
      %s145 = ssub.s32 %s10, 1
      %p146 = scmp.lt.s32.totalorder %s15, 1
      %s147 = scalar_select %p146, %s15, 1
      %s148 = smul.addr %s147, 3
      %s149 = smul.addr %s148, 4
      %s150 = scalar_lea.vmem %s0, %s149
      %p151 = pneg %p36
      %p152 = pneg %p33
      %p153 = pneg %p57
      %p154 = pneg %p54
      %p155 = pneg %p83
      %p156 = pneg %p80
      %p157 = scmp.lt.s32.totalorder %s15, 1
      %s158 = scalar_select %p157, %s15, 1
      %s159 = smul.addr %s158, 2
      %s160 = smul.addr %s159, 4
      %s161 = scalar_lea.vmem %s2, %s160
      %p162 = pneg %p109
      %p163 = pneg %p106
      %p164 = scmp.lt.s32.totalorder %s15, 1
      %s165 = scalar_select %p164, %s15, 1
      %s166 = smul.addr %s165, 2
      %s167 = scalar_lea.vmem %s3, %s166
      %p168 = scmp.lt.s32.totalorder %s15, 1
      %s169 = scalar_select %p168, %s15, 1
      %s170 = smul.addr %s169, 3
      %s171 = smul.addr %s170, 4
      %s172 = scalar_lea.vmem %s0, %s171
      %p173 = scmp.lt.s32.totalorder %s15, 1
      %s174 = scalar_select %p173, %s15, 1
      %s175 = smul.addr %s174, 2
      %s176 = smul.addr %s175, 4
      %s177 = scalar_lea.vmem %s2, %s176
      %p178 = scmp.lt.s32.totalorder %s15, 1
      %s179 = scalar_select %p178, %s15, 1
      %s180 = smul.addr %s179, 2
      %s181 = scalar_lea.vmem %s3, %s180
      %v183 = vld [vmem:[%s172] sm:$0xf]
      %v184 = vld [vmem:[%s172 + $0x4] sm:$0xf]
      %v185 = vld [vmem:[%s172 + $0x8] sm:$0x1]
      %v186 = vld [vmem:[%s1] sm:$0xf]
      %v187 = vld [vmem:[%s1 + $0x4] sm:$0xf]
      %v188 = vld [vmem:[%s1 + $0x8] sm:$0xf]
      %v189 = vld [vmem:[%s1 + $0xc] sm:$0xf]
      %v190 = vld [vmem:[%s1 + $0x10] sm:$0xf]
      %v191 = vld [vmem:[%s1 + $0x14] sm:$0xf]
      %v192 = vld [vmem:[%s1 + $0x18] sm:$0xf]
      %v193 = vld [vmem:[%s1 + $0x1c] sm:$0xf]
      %v194 = vld [vmem:[%s1 + $0x20] sm:$0xf]
      %s195 = scalar_lea.vmem %s1, 36
      %v196 = vld [vmem:[%s195] sm:$0xf]
      %v197 = vld [vmem:[%s195 + $0x4] sm:$0xf]
      %v198 = vld [vmem:[%s195 + $0x8] sm:$0xf]
      %v199 = vld [vmem:[%s195 + $0xc] sm:$0xf]
      %v200 = vld [vmem:[%s195 + $0x10] sm:$0xf]
      %v201 = vld [vmem:[%s195 + $0x14] sm:$0xf]
      %v202 = vld [vmem:[%s195 + $0x18] sm:$0xf]
      %v203 = vld [vmem:[%s195 + $0x1c] sm:$0xf]
      %v204 = vld [vmem:[%s195 + $0x20] sm:$0xf]
      %v208 = vunpack.c.l.b16 %v183
      %v209 = vunpack.c.l.b16 %v184
      %v210 = vunpack.c.l.b16 %v185
      %v211 = vpack.c.b16 %v209, %v208
      %v212 = vpack.c.b16 %v210, %v210
      %vm213 = vsmask.f32 7424
      %v215 = vshrl.u32 %v211, 16
      %v217 = vshll.u32 %v211, 16
      %v219 = vrot.slane %v217, 1
      %v220 = vor.u32 %v215, %v219
      %v222 = vshll.u32 %v212, 16
      %v224 = vrot.slane %v222, 1
      %v225 = vsel %vm213, %v220, %v224
      %v235 = vunpack.c.l.b16 %v196
      %v236 = vunpack.c.l.b16 %v197
      %v237 = vunpack.c.l.b16 %v198
      %v238 = vunpack.c.l.b16 %v199
      %v239 = vunpack.c.l.b16 %v200
      %v240 = vunpack.c.l.b16 %v201
      %v241 = vunpack.c.l.b16 %v202
      %v242 = vunpack.c.l.b16 %v203
      %v243 = vunpack.c.l.b16 %v204
      %v244 = vpack.c.b16 %v236, %v235
      %v245 = vpack.c.b16 %v238, %v237
      %v246 = vpack.c.b16 %v240, %v239
      %v247 = vpack.c.b16 %v242, %v241
      %v248 = vpack.c.b16 %v243, %v243
      %vm253 = vcmask 588800
      %v255 = vsel %vm253, %v225, 0
      %vm257 = vcmask 1043456
      %v259 = vsel %vm257, %v248, 0
      %261 = vmatprep.subr.bf16.mxu0 0
      %262 = vmatpush1.bf16.msra.mxu0 0
      %263 = vmatprep.subr.bf16.mxu0 0
      %264 = vmatpush1.bf16.msra.mxu0 0
      %265 = vmatprep.subr.bf16.mxu0 0
      %266 = vmatpush1.bf16.msra.mxu0 0
      %267 = vmatprep.subr.bf16.mxu0 0
      %268 = vmatpush1.bf16.msra.mxu0 %v259
      %269 = vmatprep.subr.bf16.mxu0 0
      %270 = vmatpush1.bf16.msra.mxu0 %v247
      %271 = vmatprep.subr.bf16.mxu0 0
      %272 = vmatpush1.bf16.msra.mxu0 %v246
      %273 = vmatprep.subr.bf16.mxu0 0
      %274 = vmatpush1.bf16.msra.mxu0 %v245
      %275 = vmatprep.subr.bf16.mxu0 0
      %276 = vmatpush1.bf16.msra.mxu0 %v244
      %277 = vmatprep.subr.bf16.mxu0 0
      %278 = vmatpush2.bf16.msra.mxu0 0
      %279 = vmatprep.subr.bf16.mxu0 0
      %280 = vmatpush2.bf16.msra.mxu0 0
      %281 = vmatprep.subr.bf16.mxu0 0
      %282 = vmatpush2.bf16.msra.mxu0 0
      %283 = vmatprep.subr.bf16.mxu0 0
      %284 = vmatpush2.bf16.msra.mxu0 0
      %285 = vmatprep.subr.bf16.mxu0 0
      %286 = vmatpush2.bf16.msra.mxu0 0
      %287 = vmatprep.subr.bf16.mxu0 0
      %288 = vmatpush2.bf16.msra.mxu0 0
      %289 = vmatprep.subr.bf16.mxu0 0
      %290 = vmatpush2.bf16.msra.mxu0 0
      %291 = vmatprep.subr.bf16.mxu0 0
      %292 = vmatpush2.bf16.msra.mxu0 0
      %293 = vmatprep.mubr.bf16.mxu0 0
      %294 = vmatmul.mubr.bf16.gmra.mxu0 %v255
      %v295 = vpop.f32.mrf.mxu0
      %v296 = vadd.f32 0.0, %v295
      %v297 = vpop.f32.mrf.mxu0
      %v298 = vpop.f32.mrf.mxu0
      %v299 = vadd.f32 0.0, %v298
      %v300 = vpop.f32.mrf.mxu0
      %301 = vdwg.mxu0
      %v311 = vunpack.c.l.b16 %v186
      %v312 = vunpack.c.l.b16 %v187
      %v313 = vunpack.c.l.b16 %v188
      %v314 = vunpack.c.l.b16 %v189
      %v315 = vunpack.c.l.b16 %v190
      %v316 = vunpack.c.l.b16 %v191
      %v317 = vunpack.c.l.b16 %v192
      %v318 = vunpack.c.l.b16 %v193
      %v319 = vunpack.c.l.b16 %v194
      %v320 = vpack.c.b16 %v312, %v311
      %v321 = vpack.c.b16 %v314, %v313
      %v322 = vpack.c.b16 %v316, %v315
      %v323 = vpack.c.b16 %v318, %v317
      %v324 = vpack.c.b16 %v319, %v319
      %v329 = vsel %vm253, %v211, 0
      %v332 = vsel %vm257, %v324, 0
      %334 = vmatprep.subr.bf16.mxu0 0
      %335 = vmatpush1.bf16.msra.mxu0 0
      %336 = vmatprep.subr.bf16.mxu0 0
      %337 = vmatpush1.bf16.msra.mxu0 0
      %338 = vmatprep.subr.bf16.mxu0 0
      %339 = vmatpush1.bf16.msra.mxu0 0
      %340 = vmatprep.subr.bf16.mxu0 0
      %341 = vmatpush1.bf16.msra.mxu0 %v332
      %342 = vmatprep.subr.bf16.mxu0 0
      %343 = vmatpush1.bf16.msra.mxu0 %v323
      %344 = vmatprep.subr.bf16.mxu0 0
      %345 = vmatpush1.bf16.msra.mxu0 %v322
      %346 = vmatprep.subr.bf16.mxu0 0
      %347 = vmatpush1.bf16.msra.mxu0 %v321
      %348 = vmatprep.subr.bf16.mxu0 0
      %349 = vmatpush1.bf16.msra.mxu0 %v320
      %350 = vmatprep.subr.bf16.mxu0 0
      %351 = vmatpush2.bf16.msra.mxu0 0
      %352 = vmatprep.subr.bf16.mxu0 0
      %353 = vmatpush2.bf16.msra.mxu0 0
      %354 = vmatprep.subr.bf16.mxu0 0
      %355 = vmatpush2.bf16.msra.mxu0 0
      %356 = vmatprep.subr.bf16.mxu0 0
      %357 = vmatpush2.bf16.msra.mxu0 0
      %358 = vmatprep.subr.bf16.mxu0 0
      %359 = vmatpush2.bf16.msra.mxu0 0
      %360 = vmatprep.subr.bf16.mxu0 0
      %361 = vmatpush2.bf16.msra.mxu0 0
      %362 = vmatprep.subr.bf16.mxu0 0
      %363 = vmatpush2.bf16.msra.mxu0 0
      %364 = vmatprep.subr.bf16.mxu0 0
      %365 = vmatpush2.bf16.msra.mxu0 0
      %366 = vmatprep.mubr.bf16.mxu0 0
      %367 = vmatmul.mubr.bf16.gmra.mxu0 %v329
      %v368 = vpop.f32.mrf.mxu0
      %v369 = vadd.f32 %v296, %v368
      %v370 = vpop.f32.mrf.mxu0
      %v371 = vpop.f32.mrf.mxu0
      %v372 = vadd.f32 %v299, %v371
      %v373 = vpop.f32.mrf.mxu0
      %374 = vdwg.mxu0
      %s375 = scalar_lea.vmem %s1, 72
      %v376 = vld [vmem:[%s375] sm:$0xf]
      %v377 = vld [vmem:[%s375 + $0x4] sm:$0xf]
      %v378 = vld [vmem:[%s375 + $0x8] sm:$0xf]
      %v379 = vld [vmem:[%s375 + $0xc] sm:$0xf]
      %v380 = vld [vmem:[%s375 + $0x10] sm:$0xf]
      %v381 = vld [vmem:[%s375 + $0x14] sm:$0xf]
      %v382 = vld [vmem:[%s375 + $0x18] sm:$0xf]
      %v383 = vld [vmem:[%s375 + $0x1c] sm:$0xf]
      %v384 = vld [vmem:[%s375 + $0x20] sm:$0xf]
      %vm385 = vcmask 1046528
      %v386 = vrot.slane %v211, 1
      %v387 = vrot.slane %v212, 1
      %v388 = vsel %vm385, %v386, %v387
      %v398 = vunpack.c.l.b16 %v376
      %v399 = vunpack.c.l.b16 %v377
      %v400 = vunpack.c.l.b16 %v378
      %v401 = vunpack.c.l.b16 %v379
      %v402 = vunpack.c.l.b16 %v380
      %v403 = vunpack.c.l.b16 %v381
      %v404 = vunpack.c.l.b16 %v382
      %v405 = vunpack.c.l.b16 %v383
      %v406 = vunpack.c.l.b16 %v384
      %v407 = vpack.c.b16 %v399, %v398
      %v408 = vpack.c.b16 %v401, %v400
      %v409 = vpack.c.b16 %v403, %v402
      %v410 = vpack.c.b16 %v405, %v404
      %v411 = vpack.c.b16 %v406, %v406
      %v417 = vsel %vm253, %v388, 0
      %v420 = vsel %vm257, %v411, 0
      %422 = vmatprep.subr.bf16.mxu0 0
      %423 = vmatpush1.bf16.msra.mxu0 0
      %424 = vmatprep.subr.bf16.mxu0 0
      %425 = vmatpush1.bf16.msra.mxu0 0
      %426 = vmatprep.subr.bf16.mxu0 0
      %427 = vmatpush1.bf16.msra.mxu0 0
      %428 = vmatprep.subr.bf16.mxu0 0
      %429 = vmatpush1.bf16.msra.mxu0 %v420
      %430 = vmatprep.subr.bf16.mxu0 0
      %431 = vmatpush1.bf16.msra.mxu0 %v410
      %432 = vmatprep.subr.bf16.mxu0 0
      %433 = vmatpush1.bf16.msra.mxu0 %v409
      %434 = vmatprep.subr.bf16.mxu0 0
      %435 = vmatpush1.bf16.msra.mxu0 %v408
      %436 = vmatprep.subr.bf16.mxu0 0
      %437 = vmatpush1.bf16.msra.mxu0 %v407
      %438 = vmatprep.subr.bf16.mxu0 0
      %439 = vmatpush2.bf16.msra.mxu0 0
      %440 = vmatprep.subr.bf16.mxu0 0
      %441 = vmatpush2.bf16.msra.mxu0 0
      %442 = vmatprep.subr.bf16.mxu0 0
      %443 = vmatpush2.bf16.msra.mxu0 0
      %444 = vmatprep.subr.bf16.mxu0 0
      %445 = vmatpush2.bf16.msra.mxu0 0
      %446 = vmatprep.subr.bf16.mxu0 0
      %447 = vmatpush2.bf16.msra.mxu0 0
      %448 = vmatprep.subr.bf16.mxu0 0
      %449 = vmatpush2.bf16.msra.mxu0 0
      %450 = vmatprep.subr.bf16.mxu0 0
      %451 = vmatpush2.bf16.msra.mxu0 0
      %452 = vmatprep.subr.bf16.mxu0 0
      %453 = vmatpush2.bf16.msra.mxu0 0
      %454 = vmatprep.mubr.bf16.mxu0 0
      %455 = vmatmul.mubr.bf16.gmra.mxu0 %v417
      %v456 = vpop.f32.mrf.mxu0
      %v457 = vadd.f32 0.0, %v456
      %v458 = vpop.f32.mrf.mxu0
      %v459 = vpop.f32.mrf.mxu0
      %v460 = vadd.f32 0.0, %v459
      %v461 = vpop.f32.mrf.mxu0
      %462 = vdwg.mxu0
      %v463 = vadd.f32 %v369, %v457
      %v464 = vadd.f32 %v372, %v460
      %v465 = vadd.f32 %v463, %v464
      %v466 = vrot.slane %v465, 4
      %v467 = vadd.f32 %v465, %v466
      %v468 = vrot.slane %v467, 2
      %v469 = vadd.f32 %v467, %v468
      %v470 = vrot.slane %v469, 1
      %v471 = vadd.f32 %v469, %v470
      %v472 = vmul.f32 %v463, %v463
      %v473 = vmul.f32 %v464, %v464
      %v474 = vadd.f32 %v472, %v473
      %v475 = vrot.slane %v474, 4
      %v476 = vadd.f32 %v474, %v475
      %v477 = vrot.slane %v476, 2
      %v478 = vadd.f32 %v476, %v477
      %v479 = vrot.slane %v478, 1
      %v480 = vadd.f32 %v478, %v479
      %vm481 = vcmask 1040384
      %v482 = vsel %vm481, %v471, %v480
      %483 = vst [vmem:[%s181] sm:$0x3] %v482
      %v484 = vpack.c.bf16 %v464, %v463
      %v486 = vunpack.c.l.b16 %v484
      %v487 = vunpack.c.h.b16 %v484
      %v488 = vpack.c.b16 %v486, %v486
      %v489 = vpack.c.b16 %v487, %v487
      %492 = vst [vmem:[%s177] sm:$0xf] %v488
      %493 = vst [vmem:[%s177 + $0x4] sm:$0xf] %v489
      %p494 = scmp.lt.s32.totalorder %s15, 1
      %s495 = scalar_select %p494, %s15, 1
      %s496 = smul.addr %s495, 2
      %s497 = smul.addr %s496, 4
      %s498 = scalar_lea.vmem %s2, %s497
      %p499 = scmp.lt.s32.totalorder %s15, 1
      %s500 = scalar_select %p499, %s15, 1
      %s501 = smul.addr %s500, 2
      %s502 = scalar_lea.vmem %s3, %s501
      // Predicated region
      $region29: #{block_forward.1} parent=27 // pred_check
        %p503 = pneg %p80
      $region30: #{block_forward.1} parent=27 // pred_check_branch
        %505 = sbr.rel (%p503) target = $region32
      $region31: #{block_forward.1} parent=27 // pred_region
        _
      $region32: #{block_forward.1} parent=27 // pred_fallthru
        _
      // Predicated region
      $region33: #{block_forward.1} parent=27 // pred_check
        %p506 = pneg %p106
      $region34: #{block_forward.1} parent=27 // pred_check_branch
        %508 = sbr.rel (%p506) target = $region36
      $region35: #{block_forward.1} parent=27 // pred_region
        _
      $region36: #{block_forward.1} parent=27 // pred_fallthru
        _
    $region28: #{block_forward.1} parent=5 // pred_fallthru
      _
    %p509 = scmp.le.s32.totalorder 2, %s10
    // Predicated region
    $region37: #{block_forward.1} parent=5 // pred_check
      %p510 = pneg %p509
    $region38: #{block_forward.1} parent=5 // pred_check_branch
      %512 = sbr.rel (%p510) target = $region40
    $region39: #{block_forward.1} parent=5 // pred_region
      %s513 = ssub.s32 %s10, 2
      // Predicated region
      $region41: #{block_forward.1} parent=39 // pred_check
        %p514 = pneg %p86
      $region42: #{block_forward.1} parent=39 // pred_check_branch
        %516 = sbr.rel (%p514) target = $region44
      $region43: #{block_forward.1} parent=39 // pred_region
        %p517 = scmp.lt.s32.totalorder %s16, 1
        %s518 = scalar_select %p517, %s16, 1
        %s519 = smul.addr %s518, 2
        %s520 = smul.addr %s519, 4
        %s521 = scalar_lea.vmem %s2, %s520
      $region44: #{block_forward.1} parent=39 // pred_fallthru
        _
      // Predicated region
      $region45: #{block_forward.1} parent=39 // pred_check
        %p522 = pneg %p112
      $region46: #{block_forward.1} parent=39 // pred_check_branch
        %524 = sbr.rel (%p522) target = $region48
      $region47: #{block_forward.1} parent=39 // pred_region
        %p525 = scmp.lt.s32.totalorder %s16, 1
        %s526 = scalar_select %p525, %s16, 1
        %s527 = smul.addr %s526, 2
        %s528 = scalar_lea.vmem %s3, %s527
      $region48: #{block_forward.1} parent=39 // pred_fallthru
        _
    $region40: #{block_forward.1} parent=5 // pred_fallthru
      _
  $region6: #{block_forward.1} parent=0 // loop_footer
    %s14 = sadd.s32 1, %s10
  $region7: #{block_forward.1} parent=0 // loop_footer_branch
    %9 = sbr.rel target = $region3
  $region8: #{block_forward.1} parent=0 // loop_exit
    _

</llo_original>
